<compile_context>
chip_gen: v5e
topology: v5e:2x2
jax: 0.10.0
libtpu: 0.0.40
codegen_flags: <defaults>
</compile_context>

<pallas_src>
import jax
import jax.numpy as jnp
from jax.experimental import pallas as pl
from jax.experimental.pallas import tpu as pltpu


def _round_up(x, m):
    return (x + m - 1) // m * m


def _linear_kernel(x_ref, w_ref, o_ref):
    # x_ref: (tm, d_inp), w_ref: (d_inp, d_model), o_ref: (tm, d_model)
    o_ref[...] = jnp.dot(
        x_ref[...], w_ref[...], preferred_element_type=jnp.float32
    ).astype(o_ref.dtype)


def time_feature_embedding(x, weight, *, tm=1024, out_dtype=None, use_pallas=None):
    """Forward pass of TimeFeatureEmbedding (bias-free linear).

    x       : (..., d_inp)
    weight  : (d_model, d_inp)   (torch nn.Linear weight layout)
    returns : (..., d_model)
    """
    *lead, d_inp = x.shape
    d_model, d_inp_w = weight.shape
    assert d_inp_w == d_inp, (weight.shape, d_inp)

    if out_dtype is None:
        out_dtype = x.dtype

    M = 1
    for s in lead:
        M *= s

    # Tiny / empty problems: launch + per-step overhead dominates -> plain XLA.
    if use_pallas is None:
        use_pallas = M > 0 and (M * d_model) >= (1 << 16)
    if (not use_pallas) or M == 0:
        w = weight.astype(x.dtype)
        out = jnp.einsum(
            "...i,oi->...o", x, w, preferred_element_type=jnp.float32
        ).astype(out_dtype)
        return out

    x2 = x.reshape(M, d_inp)
    w = jnp.transpose(weight).astype(x.dtype)  # (d_inp, d_model)

    # ---- tile selection: 1-D grid over M, N = full d_model, K = d_inp ----
    # VMEM cap: keep a double-buffered output block (~2 * tm * d_model * itemsize,
    # lane-padded to >=128) around ~16 MiB total -> safe under v7x's 32 MiB scoped
    # default and trivially under v5e/v6e's 128 MiB VMEM.
    lane_dm = max(d_model, 128)
    out_itemsize = jnp.dtype(out_dtype).itemsize
    tm_vmem = max(8, ((8 * 1024 * 1024) // (lane_dm * out_itemsize)) // 8 * 8)
    # Guarantee >= 2 M tiles so the "parallel" grid axis can shard across both
    # v7x TensorCores (no-op on 1-TC v5e/v6e).
    tm_two = max(8, _round_up(pl.cdiv(M, 2), 8))
    tm = max(8, min(tm, tm_vmem, tm_two))

    grid = (pl.cdiv(M, tm),)

    in_itemsize = jnp.dtype(x.dtype).itemsize
    cost = pl.CostEstimate(
        flops=2 * M * d_inp * d_model,
        transcendentals=0,
        bytes_accessed=in_itemsize * (M * d_inp + d_inp * d_model)
        + out_itemsize * M * d_model,
    )

    out = pl.pallas_call(
        _linear_kernel,
        out_shape=jax.ShapeDtypeStruct((M, d_model), out_dtype),
        grid=grid,
        in_specs=[
            pl.BlockSpec((tm, d_inp), lambda i: (i, 0)),
            # Weight block index is constant -> DMA'd once, stays resident.
            pl.BlockSpec((d_inp, d_model), lambda i: (0, 0)),
        ],
        out_specs=pl.BlockSpec((tm, d_model), lambda i: (i, 0)),
        compiler_params=pltpu.CompilerParams(
            dimension_semantics=("parallel",),
        ),
        cost_estimate=cost,
    )(x2, w)

    return out.reshape(*lead, d_model)


def reference_forward(x, weight):
    """Pure-JAX reference matching torch: x @ W.T (no bias)."""
    return jnp.einsum("...i,oi->...o", x, weight)


if __name__ == "__main__":
    key = jax.random.PRNGKey(0)

    # Shapes consistent with the module: freq='h' -> d_inp=4.
    d_inp = 4
    d_model = 32

    # nn.Linear default init: U(-1/sqrt(d_inp), 1/sqrt(d_inp)), no bias.
    key, kw = jax.random.split(key)
    bound = 1.0 / (d_inp ** 0.5)
    weight = jax.random.uniform(
        kw, (d_model, d_inp), dtype=jnp.float32, minval=-bound, maxval=bound
    )

    # Case 1: small shape, force the Pallas path so the kernel actually runs.
    B, L = 2, 8
    key, kx = jax.random.split(key)
    x = jax.random.normal(kx, (B, L, d_inp), dtype=jnp.float32)
    out = jax.block_until_ready(time_feature_embedding(x, weight, use_pallas=True))
    ref = reference_forward(x, weight)
    assert out.shape == (B, L, d_model), out.shape
    assert jnp.allclose(out, ref, atol=1e-5, rtol=1e-5), "mismatch (case 1)"

    # Case 2: ragged M (M=34 not a multiple of the tile) exercises in-kernel
    # boundary masking instead of wrapper-side pad/slice.
    B2, L2 = 2, 17
    key, kx2 = jax.random.split(key)
    x_rag = jax.random.normal(kx2, (B2, L2, d_inp), dtype=jnp.float32)
    out_rag = jax.block_until_ready(
        time_feature_embedding(x_rag, weight, use_pallas=True)
    )
    ref_rag = reference_forward(x_rag, weight)
    assert out_rag.shape == (B2, L2, d_model), out_rag.shape
    assert jnp.allclose(out_rag, ref_rag, atol=1e-5, rtol=1e-5), "mismatch (case 2)"

    # Case 3: auto path (tiny problem -> einsum fallback) is also correct.
    out_auto = jax.block_until_ready(time_feature_embedding(x, weight))
    assert jnp.allclose(out_auto, ref, atol=1e-5, rtol=1e-5), "mismatch (case 3)"

    print("KERNEL_OK")
</pallas_src>

<mosaic_0001>
module attributes {stable_mosaic.version = 11 : i64} {
  func.func @_linear_kernel(%arg0: i32, %arg1: memref<8x4xf32, #tpu.memory_space<vmem>>, %arg2: memref<4x32xf32, #tpu.memory_space<vmem>>, %arg3: memref<8x32xf32, #tpu.memory_space<vmem>>) attributes {dimension_semantics = [#tpu.dimension_semantics<parallel>], iteration_bounds = array<i64: 2>, scalar_prefetch = 0 : i64, scratch_operands = 0 : i64, tpu.core_type = #tpu.core_type<tc>, window_params = [{transform_indices = @transform_0, window_bounds = array<i64: 8, 4>}, {pipeline_mode = #tpu.pipeline_mode<synchronous>, transform_indices = @transform_1, window_bounds = array<i64: 4, 32>}, {transform_indices = @transform_2, window_bounds = array<i64: 8, 32>}]} {
    %c0 = arith.constant 0 : index
    %c0_0 = arith.constant 0 : index
    %0 = vector.load %arg1[%c0, %c0_0] : memref<8x4xf32, #tpu.memory_space<vmem>>, vector<8x4xf32>
    %c0_1 = arith.constant 0 : index
    %c0_2 = arith.constant 0 : index
    %1 = vector.load %arg2[%c0_1, %c0_2] : memref<4x32xf32, #tpu.memory_space<vmem>>, vector<4x32xf32>
    %cst = arith.constant dense<0.000000e+00> : vector<8x32xf32>
    %2 = tpu.matmul %0, %1, %cst {dimension_numbers = #tpu.dot_dimension_numbers<[1], [0], [0], [1], [0, 0, 1, 1], [], []>} : vector<8x4xf32>, vector<4x32xf32>, vector<8x32xf32> -> vector<8x32xf32>
    %c0_3 = arith.constant 0 : index
    %c0_4 = arith.constant 0 : index
    %3 = vector.load %arg3[%c0_3, %c0_4] : memref<8x32xf32, #tpu.memory_space<vmem>>, vector<8x32xf32>
    tpu.vector_store %arg3[%c0_3, %c0_4], %2 {strides = array<i32>} : memref<8x32xf32, #tpu.memory_space<vmem>>, vector<8x32xf32>,
    return
  }
  func.func @transform_0(%arg0: i32) -> (i32, i32) {
    %c0_i32 = arith.constant 0 : i32
    %c0_i32_0 = arith.constant 0 : i32
    return %arg0, %c0_i32 : i32, i32
  }
  func.func @transform_1(%arg0: i32) -> (i32, i32) {
    %c0_i32 = arith.constant 0 : i32
    %c0_i32_0 = arith.constant 0 : i32
    %c0_i32_1 = arith.constant 0 : i32
    return %c0_i32, %c0_i32_0 : i32, i32
  }
  func.func @transform_2(%arg0: i32) -> (i32, i32) {
    %c0_i32 = arith.constant 0 : i32
    %c0_i32_0 = arith.constant 0 : i32
    return %arg0, %c0_i32 : i32, i32
  }
}

</mosaic_0001>

<llo_original>
// kernel: tpu_custom_call.1
$region0: #{tpu_custom_call.1}
  #allocation0 [shape = 'u32[]', space=smem, size = 0x4, offset = 0x4, fixed_abs, tag = 'smem constant byte address 0x4 - core index']
  #allocation1 [shape = 'u32[72,128]{1,0:T(1,128)}', space=vmem, size = 0x9000, scoped, tag = 'internal scratch']
  %s0 = inlined_call_operand.vmem [shape: f32[16,4], index: 0, kind: input, shape index: {}]
  %s1 = inlined_call_operand.vmem [shape: f32[4,32], index: 1, kind: input, shape index: {}]
  %s2 = inlined_call_operand.hbm [shape: f32[16,32], index: 2, kind: output, shape index: {}]
  %s3 = sld [smem:[#allocation0]]
  $region41: #{tpu_custom_call.1} parent=0
    _
  %s5 = ssub.s32 1, %s3
  %s6 = scalar_select 0, %s5, %s3
  $region1: #{tpu_custom_call.1} parent=0
    #allocation2 [shape = 'u8[8192]{0}', space=vmem, size = 0x2000, scoped, tag = 'output window, operand 0']
    #allocation3 [shape = 's32[2]{0}', space=sflag, size = 0x8, scoped, tag = 'scoped memory for tpu_custom_call.1']
    %7 = vsyncpa [#allocation3], 0
    %s8 = scalar_lea.sflag [#allocation3], 1
    %9 = vsyncpa %s8, 0
    loop: start=0, step=1, limit=4
    $region2: #{tpu_custom_call.1} parent=1 // loop_pre_header
      _
    $region3: #{tpu_custom_call.1} parent=1 // loop_header
      %s11 = sphi 0, %s15
      %p12 = scmp.ge.s32.totalorder %s11, 4
      %s21 = sphi 0, %s23
      %s24 = sphi 0, %s21
      %s25 = sphi 0, %s24
      %s41 = sphi 0, %s25
      %s45 = sphi 0, %s45
      %s47 = sphi 0, %s45
      %s48 = sphi 0, %s47
      %s62 = sphi 0, %s48
      %s68 = sphi 0, %s70
      %s71 = sphi 0, %s68
      %s72 = sphi 0, %s71
      %s88 = sphi 0, %s72
    $region4: #{tpu_custom_call.1} parent=1 // loop_header_branch
      %14 = sbr.rel (%p12) target = $region8
    $region5: #{tpu_custom_call.1} parent=1 // loop_body
      %s16 = ssub.s32 %s11, 1
      %s17 = ssub.s32 %s11, 2
      %s18 = sadd.s32 %s11, 1
      %s19 = ssub.s32 %s11, %s18
      %p20 = scmp.eq.s32.totalorder %s19, 0
      %s22 = sadd.s32 %s21, 1
      %s23 = scalar_select %p20, %s21, %s22
      %p26 = pneg %p20
      %p27 = scmp.eq.s32.totalorder %s11, 1
      %p28 = por %p26, %p27
      %p29 = scmp.ne.s32.totalorder %s21, %s24
      %p30 = scmp.eq.s32.totalorder %s11, 0
      %p31 = por %p29, %p30
      %p32 = scmp.ne.s32.totalorder %s21, %s24
      %p33 = scmp.eq.s32.totalorder %s16, 1
      %p34 = por %p32, %p33
      %p35 = scmp.ne.s32.totalorder %s24, %s25
      %p36 = scmp.eq.s32.totalorder %s16, 0
      %p37 = por %p35, %p36
      %p38 = scmp.ne.s32.totalorder %s24, %s25
      %p39 = scmp.eq.s32.totalorder %s17, 1
      %p40 = por %p38, %p39
      %p42 = scmp.ne.s32.totalorder %s25, %s41
      %p43 = scmp.eq.s32.totalorder %s17, 0
      %p44 = por %p42, %p43
      %s46 = sadd.s32 %s45, 1
      %p49 = scmp.eq.s32.totalorder %s11, 1
      %p50 = scmp.ne.s32.totalorder %s45, %s47
      %p51 = scmp.eq.s32.totalorder %s11, 0
      %p52 = por %p50, %p51
      %p53 = scmp.ne.s32.totalorder %s45, %s47
      %p54 = scmp.eq.s32.totalorder %s16, 1
      %p55 = por %p53, %p54
      %p56 = scmp.ne.s32.totalorder %s47, %s48
      %p57 = scmp.eq.s32.totalorder %s16, 0
      %p58 = por %p56, %p57
      %p59 = scmp.ne.s32.totalorder %s47, %s48
      %p60 = scmp.eq.s32.totalorder %s17, 1
      %p61 = por %p59, %p60
      %p63 = scmp.ne.s32.totalorder %s48, %s62
      %p64 = scmp.eq.s32.totalorder %s17, 0
      %p65 = por %p63, %p64
      %s66 = ssub.s32 %s11, %s18
      %p67 = scmp.eq.s32.totalorder %s66, 0
      %s69 = sadd.s32 %s68, 1
      %s70 = scalar_select %p67, %s68, %s69
      %p73 = pneg %p67
      %p74 = scmp.eq.s32.totalorder %s11, 1
      %p75 = por %p73, %p74
      %p76 = scmp.ne.s32.totalorder %s68, %s71
      %p77 = scmp.eq.s32.totalorder %s11, 0
      %p78 = por %p76, %p77
      %p79 = scmp.ne.s32.totalorder %s68, %s71
      %p80 = scmp.eq.s32.totalorder %s16, 1
      %p81 = por %p79, %p80
      %p82 = scmp.ne.s32.totalorder %s71, %s72
      %p83 = scmp.eq.s32.totalorder %s16, 0
      %p84 = por %p82, %p83
      %p85 = scmp.ne.s32.totalorder %s71, %s72
      %p86 = scmp.eq.s32.totalorder %s17, 1
      %p87 = por %p85, %p86
      %p89 = scmp.ne.s32.totalorder %s72, %s88
      %p90 = scmp.eq.s32.totalorder %s17, 0
      %p91 = por %p89, %p90
      %p92 = scmp.le.s32.totalorder 1, %s11
      %p93 = scmp.lt.s32.totalorder %s11, 3
      %p94 = pnand %p92, %p93
      %p95 = pneg %p94
      // Predicated region
      $region9: #{tpu_custom_call.1} parent=5 // pred_check
        _
      $region10: #{tpu_custom_call.1} parent=5 // pred_check_branch
        %97 = sbr.rel (%p94) target = $region12
      $region11: #{tpu_custom_call.1} parent=5 // pred_region
        %s98 = ssub.s32 %s11, 1
        // Predicated region
        $region13: #{tpu_custom_call.1} parent=11 // pred_check
          %p99 = pneg %p58
        $region14: #{tpu_custom_call.1} parent=11 // pred_check_branch
          %101 = sbr.rel (%p99) target = $region16
        $region15: #{tpu_custom_call.1} parent=11 // pred_region
          _
        $region16: #{tpu_custom_call.1} parent=11 // pred_fallthru
          _
      $region12: #{tpu_custom_call.1} parent=5 // pred_fallthru
        _
      %p102 = scmp.lt.s32.totalorder %s11, 2
      // Predicated region
      $region17: #{tpu_custom_call.1} parent=5 // pred_check
        %p103 = pneg %p102
      $region18: #{tpu_custom_call.1} parent=5 // pred_check_branch
        %105 = sbr.rel (%p103) target = $region20
      $region19: #{tpu_custom_call.1} parent=5 // pred_region
        // Predicated region
        $region21: #{tpu_custom_call.1} parent=19 // pred_check
          %p106 = pneg %p31
        $region22: #{tpu_custom_call.1} parent=19 // pred_check_branch
          %108 = sbr.rel (%p106) target = $region24
        $region23: #{tpu_custom_call.1} parent=19 // pred_region
          %p109 = scmp.lt.s32.totalorder %s11, 1
          %s110 = scalar_select %p109, %s11, 1
          %s111 = smul.addr %s110, 8
          %s112 = scalar_lea.vmem %s0, %s111
        $region24: #{tpu_custom_call.1} parent=19 // pred_fallthru
          _
      $region20: #{tpu_custom_call.1} parent=5 // pred_fallthru
        _
      %p113 = scmp.le.s32.totalorder 1, %s11
      %p114 = scmp.lt.s32.totalorder %s11, 3
      %p115 = pnand %p113, %p114
      %p116 = pneg %p115
      // Predicated region
      $region25: #{tpu_custom_call.1} parent=5 // pred_check
        _
      $region26: #{tpu_custom_call.1} parent=5 // pred_check_branch
        %118 = sbr.rel (%p115) target = $region28
      $region27: #{tpu_custom_call.1} parent=5 // pred_region
        %s119 = ssub.s32 %s11, 1
        %p120 = scmp.lt.s32.totalorder %s16, 1
        %s121 = scalar_select %p120, %s16, 1
        %s122 = smul.addr %s121, 8
        %s123 = scalar_lea.vmem %s0, %s122
        %p124 = pneg %p37
        %p125 = pneg %p34
        %p126 = pneg %p58
        %p127 = pneg %p55
        %p128 = pneg %p84
        %p129 = pneg %p81
        %s130 = sand.u32 %s71, 1
        %s131 = scalar_lea.sflag [#allocation3], %s130
        %s132 = sand.u32 %s71, 1
        %s133 = smul.addr %s132, 8
        %s134 = scalar_lea.vmem [#allocation2], %s133
        %p135 = scmp.lt.s32.totalorder %s16, 1
        %s136 = scalar_select %p135, %s16, 1
        %s137 = smul.addr %s136, 8
        %s138 = scalar_lea.vmem %s0, %s137
        %v139 = vld [vmem:[%s138] sm:$0xff]
        %v140 = vld [vmem:[%s1] sm:$0xf]
        %vm141 = vcmask 31744
        %v143 = vsel %vm141, %v139, 0
        %vm145 = vcmask 1043456
        %v147 = vsel %vm145, %v140, 0
        %149 = vmatpush.msra.mxu0 0.0
        %150 = vmatpush.msra.mxu0 0.0
        %151 = vmatpush.msra.mxu0 0.0
        %152 = vmatpush.msra.mxu0 0.0
        %153 = vmatpush.msra.mxu0 0.0
        %154 = vmatpush.msra.mxu0 0.0
        %155 = vmatpush.msra.mxu0 0.0
        %156 = vmatpush.msra.mxu0 0.0
        %157 = vmatpush.msra.mxu0 0.0
        %158 = vmatpush.msra.mxu0 0.0
        %159 = vmatpush.msra.mxu0 0.0
        %160 = vmatpush.msra.mxu0 0.0
        %161 = vmatpush.msra.mxu0 0.0
        %162 = vmatpush.msra.mxu0 0.0
        %163 = vmatpush.msra.mxu0 0.0
        %164 = vmatpush.msra.mxu0 %v147
        %165 = vmatmul.f32.gmra.mxu0 %v143
        %v166 = vpop.f32.mrf.mxu0
        %v167 = vadd.f32 0.0, %v166
        %168 = vdwg.mxu0
        %vm169 = vcmask 261120
        %170 = vst.msk [vmem:[%s134] sm:$0xff] %vm169, %v167
        %s171 = sand.u32 %s71, 1
        %s172 = scalar_lea.sflag [#allocation3], %s171
        %s173 = sand.u32 %s71, 1
        %s174 = smul.addr %s173, 8
        %s175 = scalar_lea.vmem [#allocation2], %s174
        // Predicated region
        $region29: #{tpu_custom_call.1} parent=27 // pred_check
          %p176 = pneg %p81
        $region30: #{tpu_custom_call.1} parent=27 // pred_check_branch
          %178 = sbr.rel (%p176) target = $region32
        $region31: #{tpu_custom_call.1} parent=27 // pred_region
          %180 = vsyncadd %s172, 0
          %s181 = smul.addr %s16, 8
          %s182 = scalar_lea.hbm %s2, %s181
          %s184 = sshll.u32 %s175, 4
          %s185 = int_to_ptr.vmem [resolvable:$true] %s184
          %s186 = sshll.u32 %s182, 4
          %s187 = int_to_ptr.hbm [resolvable:$true] %s186
          %189 = dma.vmem_to_hbm [thread:$0]  %s185, 128, %s187, %s172
        $region32: #{tpu_custom_call.1} parent=27 // pred_fallthru
          _
      $region28: #{tpu_custom_call.1} parent=5 // pred_fallthru
        _
      %p190 = scmp.le.s32.totalorder 2, %s11
      // Predicated region
      $region33: #{tpu_custom_call.1} parent=5 // pred_check
        %p191 = pneg %p190
      $region34: #{tpu_custom_call.1} parent=5 // pred_check_branch
        %193 = sbr.rel (%p191) target = $region36
      $region35: #{tpu_custom_call.1} parent=5 // pred_region
        %s194 = ssub.s32 %s11, 2
        // Predicated region
        $region37: #{tpu_custom_call.1} parent=35 // pred_check
          %p195 = pneg %p87
        $region38: #{tpu_custom_call.1} parent=35 // pred_check_branch
          %197 = sbr.rel (%p195) target = $region40
        $region39: #{tpu_custom_call.1} parent=35 // pred_region
          %s198 = sand.u32 %s72, 1
          %s199 = scalar_lea.sflag [#allocation3], %s198
          %s200 = sand.u32 %s72, 1
          %s201 = smul.addr %s200, 8
          %s202 = scalar_lea.vmem [#allocation2], %s201
          %204 = dma.done %s199, 128
        $region40: #{tpu_custom_call.1} parent=35 // pred_fallthru
          _
      $region36: #{tpu_custom_call.1} parent=5 // pred_fallthru
        _
    $region6: #{tpu_custom_call.1} parent=1 // loop_footer
      %s15 = sadd.s32 1, %s11
    $region7: #{tpu_custom_call.1} parent=1 // loop_footer_branch
      %10 = sbr.rel target = $region3
    $region8: #{tpu_custom_call.1} parent=1 // loop_exit
      _
    %205 = vsyncpa [#allocation3], 1
    %s206 = scalar_lea.sflag [#allocation3], 1
    %207 = vsyncpa %s206, 1

</llo_original>
